<compile_context>
chip_gen: v5e
topology: v5e:2x2
jax: 0.10.0
libtpu: 0.0.40
codegen_flags: <defaults>
</compile_context>

<pallas_src>
import functools
from typing import NamedTuple

import jax
import jax.numpy as jnp
from jax.experimental import pallas as pl
from jax.experimental.pallas import tpu as pltpu


# ------------------------------ slab layout ---------------------------------

class SlabLayout(NamedTuple):
    H: int
    E: int
    O: int
    n_max: int
    w_rows: int
    b_rows: int
    w: dict      # name -> (row_offset, n_rows, n_cols)  in the weight slab
    b: dict      # name -> (row, n_cols)                  in the bias slab


def _rup(x, m):
    return (x + m - 1) // m * m


def make_layout(H, E, O):
    n_max = max(3 * H, H, O)
    w = {}
    row = 0
    for name, nr, nc in [("attn_wh", H, H), ("attn_we", H, H),
                         ("wih0_e", E, 3 * H), ("wih0_c", H, 3 * H),
                         ("whh0", H, 3 * H), ("wih1", H, 3 * H), ("whh1", H, 3 * H),
                         ("conc_h", H, H), ("conc_c", H, H), ("out_w", H, O)]:
        w[name] = (row, nr, nc)
        row += _rup(nr, 16)          # keep block starts bf16-tile aligned
    b = {"attn_b": (0, H), "bih0": (1, 3 * H), "bhh0": (2, 3 * H),
         "bih1": (3, 3 * H), "bhh1": (4, 3 * H), "conc_b": (5, H),
         "out_b": (6, O), "score": (7, H)}
    return SlabLayout(H=H, E=E, O=O, n_max=n_max, w_rows=row, b_rows=8, w=w, b=b)


def pack_params(params, matmul_dtype=jnp.bfloat16):
    """Pack the per-layer weights into one weight slab + one bias slab (call once)."""
    H = params["attn_wh"].shape[0]
    E = params["embedding"].shape[1]
    O = params["out_w"].shape[1]
    lay = make_layout(H, E, O)

    w_slab = jnp.zeros((lay.w_rows, lay.n_max), jnp.float32)
    pieces = {
        "attn_wh": params["attn_wh"], "attn_we": params["attn_we"],
        "wih0_e": params["wih0"][:E], "wih0_c": params["wih0"][E:],
        "whh0": params["whh0"], "wih1": params["wih1"], "whh1": params["whh1"],
        "conc_h": params["conc_w"][:H], "conc_c": params["conc_w"][H:],
        "out_w": params["out_w"],
    }
    for name, mat in pieces.items():
        r, nr, nc = lay.w[name]
        w_slab = w_slab.at[r:r + nr, 0:nc].set(mat)

    b_slab = jnp.zeros((lay.b_rows, lay.n_max), jnp.float32)
    brows = {"attn_b": params["attn_b"], "bih0": params["bih0"], "bhh0": params["bhh0"],
             "bih1": params["bih1"], "bhh1": params["bhh1"], "conc_b": params["conc_b"],
             "out_b": params["out_b"], "score": params["score_w"]}
    for name, vec in brows.items():
        r, nc = lay.b[name]
        b_slab = b_slab.at[r, 0:nc].set(vec.reshape(-1))

    return {"embedding": params["embedding"],
            "w_slab": w_slab.astype(matmul_dtype),
            "b_slab": b_slab}


# ------------------------------ Pallas kernel --------------------------------

def attn_decoder_kernel(lay, emb_ref, h_ref, enc_ref, mask_ref, w_ref, b_ref,
                        out_ref, hid_ref):
    H = lay.H

    def w(name):                         # static sublane/lane slices of the slab
        r, nr, nc = lay.w[name]
        return w_ref[r:r + nr, 0:nc]

    def bias(name):
        r, nc = lay.b[name]
        return b_ref[r:r + 1, 0:nc]      # (1, nc), broadcast over sublanes

    def mm(x, name):                     # MXU dot, f32 accumulation
        wt = w(name)
        return jnp.dot(x.astype(wt.dtype), wt, preferred_element_type=jnp.float32)

    emb = emb_ref[...]                   # (B, E)  f32
    h0_prev = h_ref[0]                   # (B, H)
    h1_prev = h_ref[1]                   # (B, H)  (= last layer hidden)
    enc = enc_ref[...]                   # (S, B, H) seq-major, no transpose needed
    S, B, _ = enc.shape

    # ---- attention: score . tanh(W_h h + W_e enc + b), masked softmax over S ----
    h_proj = mm(h1_prev, "attn_wh") + bias("attn_b")                 # (B, H)
    e_proj = mm(enc.reshape(S * B, H), "attn_we").reshape(S, B, H)   # (S, B, H)
    feat = jnp.tanh(e_proj + h_proj[None, :, :])                     # (S, B, H)
    en = jnp.sum(feat * bias("score"), axis=2, keepdims=True)        # (S, B, 1)
    en = jnp.where(mask_ref[...] > 0.5, -1e12, en)
    m = jnp.max(en, axis=0, keepdims=True)                           # outer-axis reduce
    p = jnp.exp(en - m)
    inv = pl.reciprocal(jnp.sum(p, axis=0, keepdims=True), approx=True)
    attn_w = p * inv                                                 # (S, B, 1)
    context = jnp.sum(attn_w * enc, axis=0)                          # (B, H)

    # ---- 2-layer GRU, seq length 1, split-weight sum-of-dots (no lane concat) ----
    def gru(gi, gh, h_prev):
        r = jax.nn.sigmoid(gi[:, 0:H] + gh[:, 0:H])
        z = jax.nn.sigmoid(gi[:, H:2 * H] + gh[:, H:2 * H])
        n = jnp.tanh(gi[:, 2 * H:3 * H] + r * gh[:, 2 * H:3 * H])
        return (1.0 - z) * n + z * h_prev

    gi0 = mm(emb, "wih0_e") + mm(context, "wih0_c") + bias("bih0")   # (B, 3H)
    gh0 = mm(h0_prev, "whh0") + bias("bhh0")
    h0 = gru(gi0, gh0, h0_prev)
    # TODO(synk): em_dropout and inter-layer GRU dropout are identity (eval mode).
    gi1 = mm(h0, "wih1") + bias("bih1")
    gh1 = mm(h1_prev, "whh1") + bias("bhh1")
    h1 = gru(gi1, gh1, h1_prev)
    hid_ref[...] = jnp.concatenate([h0[None], h1[None]], axis=0)     # one full store

    # ---- output head: out(tanh(concat_w . [rnn_out, context])) -------------------
    conc = jnp.tanh(mm(h1, "conc_h") + mm(context, "conc_c") + bias("conc_b"))
    out_ref[...] = mm(conc, "out_w") + bias("out_b")


# --------------------------------- wrapper -----------------------------------

@functools.partial(jax.jit, static_argnames=("out_size",))
def attn_decoder_forward(packed, input_seq, last_hidden, encoder_outputs, seq_mask,
                         *, out_size):
    L, B, H = last_hidden.shape
    assert L == 2, "kernel is specialized for the module default n_layers=2"
    S = encoder_outputs.shape[0]
    E = packed["embedding"].shape[1]
    lay = make_layout(H, E, out_size)

    emb = packed["embedding"][input_seq]                      # (B, E) gather (XLA glue)
    mask_t = seq_mask.astype(jnp.float32).T[:, :, None]       # (S, B, 1), 1.0 => padded

    kernel = functools.partial(attn_decoder_kernel, lay)
    out, hidden = pl.pallas_call(
        kernel,
        out_shape=(jax.ShapeDtypeStruct((B, out_size), jnp.float32),
                   jax.ShapeDtypeStruct((L, B, H), jnp.float32)),
        in_specs=[pl.BlockSpec(memory_space=pltpu.MemorySpace.VMEM)] * 6,
        out_specs=(pl.BlockSpec(memory_space=pltpu.MemorySpace.VMEM),
                   pl.BlockSpec(memory_space=pltpu.MemorySpace.VMEM)),
        input_output_aliases={1: 1},     # new hidden reuses last_hidden's buffer
    )(emb, last_hidden, encoder_outputs, mask_t,
      packed["w_slab"], packed["b_slab"])
    return out, hidden


# ------------------------ deterministic parameter init ----------------------

def init_params(key, hidden_size, embedding_size, input_size, output_size):
    H, E = hidden_size, embedding_size
    keys = jax.random.split(key, 18)

    def lin(k, fan_in, shape):
        return (jax.random.normal(k, shape, jnp.float32) / jnp.sqrt(float(fan_in)))

    emb_w = lin(keys[0], 1.0, (input_size, E))
    emb_w = emb_w.at[0].set(0.0)                      # padding_idx=0
    return dict(
        embedding=emb_w,
        # Attn: Linear(2H -> H) split into hidden / encoder halves, score(H -> 1)
        attn_wh=lin(keys[1], 2 * H, (H, H)),
        attn_we=lin(keys[2], 2 * H, (H, H)),
        attn_b=lin(keys[3], 2 * H, (1, H)),
        score_w=lin(keys[4], H, (1, H)),
        # GRU layer 0 (input = H + E), layer 1 (input = H); weights stored (in, 3H)
        wih0=lin(keys[5], H + E, (H + E, 3 * H)),
        whh0=lin(keys[6], H, (H, 3 * H)),
        bih0=lin(keys[7], H, (1, 3 * H)),
        bhh0=lin(keys[8], H, (1, 3 * H)),
        wih1=lin(keys[9], H, (H, 3 * H)),
        whh1=lin(keys[10], H, (H, 3 * H)),
        bih1=lin(keys[11], H, (1, 3 * H)),
        bhh1=lin(keys[12], H, (1, 3 * H)),
        # concat: Linear(2H -> H); out: Linear(H -> output_size)
        conc_w=lin(keys[13], 2 * H, (2 * H, H)),
        conc_b=lin(keys[14], 2 * H, (1, H)),
        out_w=lin(keys[15], H, (H, output_size)),
        out_b=lin(keys[16], H, (1, output_size)),
    )


# ----------------------------- pure-JAX reference ---------------------------

def reference_forward(params, input_seq, last_hidden, encoder_outputs, seq_mask):
    emb = params["embedding"][input_seq]
    S, B, H = encoder_outputs.shape
    enc_bsh = jnp.transpose(encoder_outputs, (1, 0, 2))
    h_last = last_hidden[-1]
    h_proj = h_last @ params["attn_wh"] + params["attn_b"]
    e_proj = (enc_bsh.reshape(B * S, H) @ params["attn_we"]).reshape(B, S, H)
    feat = jnp.tanh(h_proj[:, None, :] + e_proj)
    energies = jnp.sum(feat * params["score_w"][None], axis=2)
    energies = jnp.where(seq_mask > 0, -1e12, energies)
    attn_w = jax.nn.softmax(energies, axis=1)
    context = jnp.einsum("bs,bsh->bh", attn_w, enc_bsh)

    def cell(x, hprev, wih, whh, bih, bhh):
        gi = x @ wih + bih
        gh = hprev @ whh + bhh
        i_r, i_z, i_n = jnp.split(gi, 3, axis=1)
        h_r, h_z, h_n = jnp.split(gh, 3, axis=1)
        r = jax.nn.sigmoid(i_r + h_r)
        z = jax.nn.sigmoid(i_z + h_z)
        n = jnp.tanh(i_n + r * h_n)
        return (1.0 - z) * n + z * hprev

    x0 = jnp.concatenate([emb, context], axis=1)
    h0 = cell(x0, last_hidden[0], params["wih0"], params["whh0"],
              params["bih0"], params["bhh0"])
    h1 = cell(h0, last_hidden[1], params["wih1"], params["whh1"],
              params["bih1"], params["bhh1"])
    cat2 = jnp.concatenate([h1, context], axis=1)
    conc = jnp.tanh(cat2 @ params["conc_w"] + params["conc_b"])
    out = conc @ params["out_w"] + params["out_b"]
    return out, jnp.stack([h0, h1], axis=0)


# ----------------------------------- main ------------------------------------

if __name__ == "__main__":
    H, E, V, O, L = 32, 32, 20, 16, 2      # hidden, embedding, vocab, output, n_layers
    B, S = 8, 8                            # batch (>=8 fills sublanes), encoder length

    key = jax.random.PRNGKey(0)
    kp, k1, k2, k3 = jax.random.split(key, 4)
    params = init_params(kp, H, E, V, O)
    packed = pack_params(params)           # one-time weight/bias slab packing (bf16/f32)

    input_seq = jax.random.randint(k1, (B,), 0, V)                      # (B,)
    last_hidden = jax.random.normal(k2, (L, B, H), jnp.float32)         # (L, B, H)
    encoder_outputs = jax.random.normal(k3, (S, B, H), jnp.float32)     # (S, B, H)
    lengths = jnp.array([8, 5, 3, 6, 2, 7, 4, 8])
    seq_mask = (jnp.arange(S)[None, :] >= lengths[:, None]).astype(jnp.int32)  # (B, S)

    out, hidden = attn_decoder_forward(packed, input_seq, last_hidden,
                                       encoder_outputs, seq_mask, out_size=O)
    jax.block_until_ready((out, hidden))

    ref_out, ref_hidden = reference_forward(params, input_seq, last_hidden,
                                            encoder_outputs, seq_mask)
    assert out.shape == (B, O) and hidden.shape == (L, B, H)
    # bf16 MXU operands + approx reciprocal -> slightly relaxed tolerance vs f32 ref.
    assert jnp.allclose(out, ref_out, atol=5e-2, rtol=5e-2)
    assert jnp.allclose(hidden, ref_hidden, atol=5e-2, rtol=5e-2)
    print("KERNEL_OK")
</pallas_src>

<mosaic_0001>
module attributes {stable_mosaic.version = 11 : i64} {
  func.func @attn_decoder_kernel(%arg0: memref<8x32xf32, #tpu.memory_space<vmem>>, %arg1: memref<2x8x32xf32, #tpu.memory_space<vmem>>, %arg2: memref<8x8x32xf32, #tpu.memory_space<vmem>>, %arg3: memref<8x8x1xf32, #tpu.memory_space<vmem>>, %arg4: memref<320x96xbf16, #tpu.memory_space<vmem>>, %arg5: memref<8x96xf32, #tpu.memory_space<vmem>>, %arg6: memref<8x16xf32, #tpu.memory_space<vmem>>, %arg7: memref<2x8x32xf32, #tpu.memory_space<vmem>>) attributes {dimension_semantics = [], scalar_prefetch = 0 : i64, scratch_operands = 0 : i64, tpu.core_type = #tpu.core_type<tc>} {
    %c0 = arith.constant 0 : index
    %c0_0 = arith.constant 0 : index
    %0 = vector.load %arg0[%c0, %c0_0] : memref<8x32xf32, #tpu.memory_space<vmem>>, vector<8x32xf32>
    %c0_1 = arith.constant 0 : index
    %c0_2 = arith.constant 0 : index
    %c0_3 = arith.constant 0 : index
    %1 = vector.load %arg1[%c0_1, %c0_2, %c0_3] : memref<2x8x32xf32, #tpu.memory_space<vmem>>, vector<1x8x32xf32>
    %2 = vector.shape_cast %1 : vector<1x8x32xf32> to vector<8x32xf32>
    %c1 = arith.constant 1 : index
    %c0_4 = arith.constant 0 : index
    %c0_5 = arith.constant 0 : index
    %3 = vector.load %arg1[%c1, %c0_4, %c0_5] : memref<2x8x32xf32, #tpu.memory_space<vmem>>, vector<1x8x32xf32>
    %4 = vector.shape_cast %3 : vector<1x8x32xf32> to vector<8x32xf32>
    %c0_6 = arith.constant 0 : index
    %c0_7 = arith.constant 0 : index
    %c0_8 = arith.constant 0 : index
    %5 = vector.load %arg2[%c0_6, %c0_7, %c0_8] : memref<8x8x32xf32, #tpu.memory_space<vmem>>, vector<8x8x32xf32>
    %c0_9 = arith.constant 0 : index
    %c0_10 = arith.constant 0 : index
    %6 = vector.load %arg4[%c0_9, %c0_10] : memref<320x96xbf16, #tpu.memory_space<vmem>>, vector<32x32xbf16>
    %7 = arith.truncf %4 : vector<8x32xf32> to vector<8x32xbf16>
    %cst = arith.constant dense<0.000000e+00> : vector<8x32xf32>
    %8 = tpu.matmul %7, %6, %cst {dimension_numbers = #tpu.dot_dimension_numbers<[1], [0], [0], [1], [0, 0, 1, 1], [], []>} : vector<8x32xbf16>, vector<32x32xbf16>, vector<8x32xf32> -> vector<8x32xf32>
    %c0_11 = arith.constant 0 : index
    %c0_12 = arith.constant 0 : index
    %9 = vector.load %arg5[%c0_11, %c0_12] : memref<8x96xf32, #tpu.memory_space<vmem>>, vector<1x32xf32>
    %10 = vector.broadcast %9 : vector<1x32xf32> to vector<8x32xf32>
    %11 = arith.addf %8, %10 : vector<8x32xf32>
    %12 = vector.shape_cast %5 : vector<8x8x32xf32> to vector<64x32xf32>
    %c32 = arith.constant 32 : index
    %c0_13 = arith.constant 0 : index
    %13 = vector.load %arg4[%c32, %c0_13] : memref<320x96xbf16, #tpu.memory_space<vmem>>, vector<32x32xbf16>
    %14 = arith.truncf %12 : vector<64x32xf32> to vector<64x32xbf16>
    %cst_14 = arith.constant dense<0.000000e+00> : vector<64x32xf32>
    %15 = tpu.matmul %14, %13, %cst_14 {dimension_numbers = #tpu.dot_dimension_numbers<[1], [0], [0], [1], [0, 0, 1, 1], [], []>} : vector<64x32xbf16>, vector<32x32xbf16>, vector<64x32xf32> -> vector<64x32xf32>
    %16 = vector.shape_cast %15 : vector<64x32xf32> to vector<8x8x32xf32>
    %17 = vector.shape_cast %11 : vector<8x32xf32> to vector<1x8x32xf32>
    %18 = vector.broadcast %17 : vector<1x8x32xf32> to vector<8x8x32xf32>
    %19 = arith.addf %16, %18 : vector<8x8x32xf32>
    %20 = math.tanh %19 : vector<8x8x32xf32>
    %c7 = arith.constant 7 : index
    %c0_15 = arith.constant 0 : index
    %21 = vector.load %arg5[%c7, %c0_15] : memref<8x96xf32, #tpu.memory_space<vmem>>, vector<1x32xf32>
    %22 = vector.shape_cast %21 : vector<1x32xf32> to vector<1x1x32xf32>
    %23 = vector.broadcast %22 : vector<1x1x32xf32> to vector<8x8x32xf32>
    %24 = arith.mulf %20, %23 : vector<8x8x32xf32>
    %cst_16 = arith.constant dense<0.000000e+00> : vector<8x8xf32>
    %25 = vector.multi_reduction <add>, %24, %cst_16 [2] : vector<8x8x32xf32> to vector<8x8xf32>
    %26 = vector.shape_cast %25 : vector<8x8xf32> to vector<8x8x1xf32>
    %c0_17 = arith.constant 0 : index
    %c0_18 = arith.constant 0 : index
    %c0_19 = arith.constant 0 : index
    %27 = vector.load %arg3[%c0_17, %c0_18, %c0_19] : memref<8x8x1xf32, #tpu.memory_space<vmem>>, vector<8x8x1xf32>
    %cst_20 = arith.constant 5.000000e-01 : f32
    %28 = vector.broadcast %cst_20 : f32 to vector<8x8x1xf32>
    %29 = arith.cmpf ogt, %27, %28 : vector<8x8x1xf32>
    %cst_21 = arith.constant -9.99999995E+11 : f32
    %30 = vector.broadcast %cst_21 : f32 to vector<8x8x1xf32>
    %31 = arith.select %29, %30, %26 : vector<8x8x1xi1>, vector<8x8x1xf32>
    %cst_22 = arith.constant dense<0xFF800000> : vector<8x1xf32>
    %32 = vector.multi_reduction <maximumf>, %31, %cst_22 [0] : vector<8x8x1xf32> to vector<8x1xf32>
    %33 = vector.shape_cast %32 : vector<8x1xf32> to vector<1x8x1xf32>
    %34 = vector.broadcast %33 : vector<1x8x1xf32> to vector<8x8x1xf32>
    %35 = arith.subf %31, %34 : vector<8x8x1xf32>
    %36 = math.exp %35 : vector<8x8x1xf32>
    %cst_23 = arith.constant dense<0.000000e+00> : vector<8x1xf32>
    %37 = vector.multi_reduction <add>, %36, %cst_23 [0] : vector<8x8x1xf32> to vector<8x1xf32>
    %38 = vector.shape_cast %37 : vector<8x1xf32> to vector<1x8x1xf32>
    %39 = tpu.reciprocal %38 {approx = true} : vector<1x8x1xf32> -> vector<1x8x1xf32>
    %40 = vector.broadcast %39 : vector<1x8x1xf32> to vector<8x8x1xf32>
    %41 = arith.mulf %36, %40 : vector<8x8x1xf32>
    %42 = vector.broadcast %41 : vector<8x8x1xf32> to vector<8x8x32xf32>
    %43 = arith.mulf %42, %5 : vector<8x8x32xf32>
    %cst_24 = arith.constant dense<0.000000e+00> : vector<8x32xf32>
    %44 = vector.multi_reduction <add>, %43, %cst_24 [0] : vector<8x8x32xf32> to vector<8x32xf32>
    %c64 = arith.constant 64 : index
    %c0_25 = arith.constant 0 : index
    %45 = vector.load %arg4[%c64, %c0_25] : memref<320x96xbf16, #tpu.memory_space<vmem>>, vector<32x96xbf16>
    %46 = arith.truncf %0 : vector<8x32xf32> to vector<8x32xbf16>
    %cst_26 = arith.constant dense<0.000000e+00> : vector<8x96xf32>
    %47 = tpu.matmul %46, %45, %cst_26 {dimension_numbers = #tpu.dot_dimension_numbers<[1], [0], [0], [1], [0, 0, 1, 1], [], []>} : vector<8x32xbf16>, vector<32x96xbf16>, vector<8x96xf32> -> vector<8x96xf32>
    %c96 = arith.constant 96 : index
    %c0_27 = arith.constant 0 : index
    %48 = vector.load %arg4[%c96, %c0_27] : memref<320x96xbf16, #tpu.memory_space<vmem>>, vector<32x96xbf16>
    %49 = arith.truncf %44 : vector<8x32xf32> to vector<8x32xbf16>
    %cst_28 = arith.constant dense<0.000000e+00> : vector<8x96xf32>
    %50 = tpu.matmul %49, %48, %cst_28 {dimension_numbers = #tpu.dot_dimension_numbers<[1], [0], [0], [1], [0, 0, 1, 1], [], []>} : vector<8x32xbf16>, vector<32x96xbf16>, vector<8x96xf32> -> vector<8x96xf32>
    %51 = arith.addf %47, %50 : vector<8x96xf32>
    %c1_29 = arith.constant 1 : index
    %c0_30 = arith.constant 0 : index
    %52 = vector.load %arg5[%c1_29, %c0_30] : memref<8x96xf32, #tpu.memory_space<vmem>>, vector<1x96xf32>
    %53 = vector.broadcast %52 : vector<1x96xf32> to vector<8x96xf32>
    %54 = arith.addf %51, %53 : vector<8x96xf32>
    %c128 = arith.constant 128 : index
    %c0_31 = arith.constant 0 : index
    %55 = vector.load %arg4[%c128, %c0_31] : memref<320x96xbf16, #tpu.memory_space<vmem>>, vector<32x96xbf16>
    %56 = arith.truncf %2 : vector<8x32xf32> to vector<8x32xbf16>
    %cst_32 = arith.constant dense<0.000000e+00> : vector<8x96xf32>
    %57 = tpu.matmul %56, %55, %cst_32 {dimension_numbers = #tpu.dot_dimension_numbers<[1], [0], [0], [1], [0, 0, 1, 1], [], []>} : vector<8x32xbf16>, vector<32x96xbf16>, vector<8x96xf32> -> vector<8x96xf32>
    %c2 = arith.constant 2 : index
    %c0_33 = arith.constant 0 : index
    %58 = vector.load %arg5[%c2, %c0_33] : memref<8x96xf32, #tpu.memory_space<vmem>>, vector<1x96xf32>
    %59 = vector.broadcast %58 : vector<1x96xf32> to vector<8x96xf32>
    %60 = arith.addf %57, %59 : vector<8x96xf32>
    %61 = vector.extract_strided_slice %54 {offsets = [0, 0], sizes = [8, 32], strides = [1, 1]} : vector<8x96xf32> to vector<8x32xf32>
    %62 = vector.extract_strided_slice %60 {offsets = [0, 0], sizes = [8, 32], strides = [1, 1]} : vector<8x96xf32> to vector<8x32xf32>
    %63 = arith.addf %61, %62 : vector<8x32xf32>
    %64 = arith.negf %63 : vector<8x32xf32>
    %65 = math.exp %64 : vector<8x32xf32>
    %cst_34 = arith.constant 1.000000e+00 : f32
    %66 = vector.broadcast %cst_34 : f32 to vector<8x32xf32>
    %67 = arith.addf %66, %65 : vector<8x32xf32>
    %68 = arith.divf %66, %67 : vector<8x32xf32>
    %69 = vector.extract_strided_slice %54 {offsets = [0, 32], sizes = [8, 32], strides = [1, 1]} : vector<8x96xf32> to vector<8x32xf32>
    %70 = vector.extract_strided_slice %60 {offsets = [0, 32], sizes = [8, 32], strides = [1, 1]} : vector<8x96xf32> to vector<8x32xf32>
    %71 = arith.addf %69, %70 : vector<8x32xf32>
    %72 = arith.negf %71 : vector<8x32xf32>
    %73 = math.exp %72 : vector<8x32xf32>
    %cst_35 = arith.constant 1.000000e+00 : f32
    %74 = vector.broadcast %cst_35 : f32 to vector<8x32xf32>
    %75 = arith.addf %74, %73 : vector<8x32xf32>
    %76 = arith.divf %74, %75 : vector<8x32xf32>
    %77 = vector.extract_strided_slice %54 {offsets = [0, 64], sizes = [8, 32], strides = [1, 1]} : vector<8x96xf32> to vector<8x32xf32>
    %78 = vector.extract_strided_slice %60 {offsets = [0, 64], sizes = [8, 32], strides = [1, 1]} : vector<8x96xf32> to vector<8x32xf32>
    %79 = arith.mulf %68, %78 : vector<8x32xf32>
    %80 = arith.addf %77, %79 : vector<8x32xf32>
    %81 = math.tanh %80 : vector<8x32xf32>
    %cst_36 = arith.constant 1.000000e+00 : f32
    %82 = vector.broadcast %cst_36 : f32 to vector<8x32xf32>
    %83 = arith.subf %82, %76 : vector<8x32xf32>
    %84 = arith.mulf %83, %81 : vector<8x32xf32>
    %85 = arith.mulf %76, %2 : vector<8x32xf32>
    %86 = arith.addf %84, %85 : vector<8x32xf32>
    %c160 = arith.constant 160 : index
    %c0_37 = arith.constant 0 : index
    %87 = vector.load %arg4[%c160, %c0_37] : memref<320x96xbf16, #tpu.memory_space<vmem>>, vector<32x96xbf16>
    %88 = arith.truncf %86 : vector<8x32xf32> to vector<8x32xbf16>
    %cst_38 = arith.constant dense<0.000000e+00> : vector<8x96xf32>
    %89 = tpu.matmul %88, %87, %cst_38 {dimension_numbers = #tpu.dot_dimension_numbers<[1], [0], [0], [1], [0, 0, 1, 1], [], []>} : vector<8x32xbf16>, vector<32x96xbf16>, vector<8x96xf32> -> vector<8x96xf32>
    %c3 = arith.constant 3 : index
    %c0_39 = arith.constant 0 : index
    %90 = vector.load %arg5[%c3, %c0_39] : memref<8x96xf32, #tpu.memory_space<vmem>>, vector<1x96xf32>
    %91 = vector.broadcast %90 : vector<1x96xf32> to vector<8x96xf32>
    %92 = arith.addf %89, %91 : vector<8x96xf32>
    %c192 = arith.constant 192 : index
    %c0_40 = arith.constant 0 : index
    %93 = vector.load %arg4[%c192, %c0_40] : memref<320x96xbf16, #tpu.memory_space<vmem>>, vector<32x96xbf16>
    %94 = arith.truncf %4 : vector<8x32xf32> to vector<8x32xbf16>
    %cst_41 = arith.constant dense<0.000000e+00> : vector<8x96xf32>
    %95 = tpu.matmul %94, %93, %cst_41 {dimension_numbers = #tpu.dot_dimension_numbers<[1], [0], [0], [1], [0, 0, 1, 1], [], []>} : vector<8x32xbf16>, vector<32x96xbf16>, vector<8x96xf32> -> vector<8x96xf32>
    %c4 = arith.constant 4 : index
    %c0_42 = arith.constant 0 : index
    %96 = vector.load %arg5[%c4, %c0_42] : memref<8x96xf32, #tpu.memory_space<vmem>>, vector<1x96xf32>
    %97 = vector.broadcast %96 : vector<1x96xf32> to vector<8x96xf32>
    %98 = arith.addf %95, %97 : vector<8x96xf32>
    %99 = vector.extract_strided_slice %92 {offsets = [0, 0], sizes = [8, 32], strides = [1, 1]} : vector<8x96xf32> to vector<8x32xf32>
    %100 = vector.extract_strided_slice %98 {offsets = [0, 0], sizes = [8, 32], strides = [1, 1]} : vector<8x96xf32> to vector<8x32xf32>
    %101 = arith.addf %99, %100 : vector<8x32xf32>
    %102 = arith.negf %101 : vector<8x32xf32>
    %103 = math.exp %102 : vector<8x32xf32>
    %cst_43 = arith.constant 1.000000e+00 : f32
    %104 = vector.broadcast %cst_43 : f32 to vector<8x32xf32>
    %105 = arith.addf %104, %103 : vector<8x32xf32>
    %106 = arith.divf %104, %105 : vector<8x32xf32>
    %107 = vector.extract_strided_slice %92 {offsets = [0, 32], sizes = [8, 32], strides = [1, 1]} : vector<8x96xf32> to vector<8x32xf32>
    %108 = vector.extract_strided_slice %98 {offsets = [0, 32], sizes = [8, 32], strides = [1, 1]} : vector<8x96xf32> to vector<8x32xf32>
    %109 = arith.addf %107, %108 : vector<8x32xf32>
    %110 = arith.negf %109 : vector<8x32xf32>
    %111 = math.exp %110 : vector<8x32xf32>
    %cst_44 = arith.constant 1.000000e+00 : f32
    %112 = vector.broadcast %cst_44 : f32 to vector<8x32xf32>
    %113 = arith.addf %112, %111 : vector<8x32xf32>
    %114 = arith.divf %112, %113 : vector<8x32xf32>
    %115 = vector.extract_strided_slice %92 {offsets = [0, 64], sizes = [8, 32], strides = [1, 1]} : vector<8x96xf32> to vector<8x32xf32>
    %116 = vector.extract_strided_slice %98 {offsets = [0, 64], sizes = [8, 32], strides = [1, 1]} : vector<8x96xf32> to vector<8x32xf32>
    %117 = arith.mulf %106, %116 : vector<8x32xf32>
    %118 = arith.addf %115, %117 : vector<8x32xf32>
    %119 = math.tanh %118 : vector<8x32xf32>
    %cst_45 = arith.constant 1.000000e+00 : f32
    %120 = vector.broadcast %cst_45 : f32 to vector<8x32xf32>
    %121 = arith.subf %120, %114 : vector<8x32xf32>
    %122 = arith.mulf %121, %119 : vector<8x32xf32>
    %123 = arith.mulf %114, %4 : vector<8x32xf32>
    %124 = arith.addf %122, %123 : vector<8x32xf32>
    %125 = vector.shape_cast %86 : vector<8x32xf32> to vector<1x8x32xf32>
    %126 = vector.shape_cast %124 : vector<8x32xf32> to vector<1x8x32xf32>
    %127 = tpu.concatenate %125, %126 in 0 : vector<1x8x32xf32>, vector<1x8x32xf32> -> vector<2x8x32xf32>
    %c0_46 = arith.constant 0 : index
    %c0_47 = arith.constant 0 : index
    %c0_48 = arith.constant 0 : index
    %128 = vector.load %arg7[%c0_46, %c0_47, %c0_48] : memref<2x8x32xf32, #tpu.memory_space<vmem>>, vector<2x8x32xf32>
    tpu.vector_store %arg7[%c0_46, %c0_47, %c0_48], %127 {strides = array<i32>} : memref<2x8x32xf32, #tpu.memory_space<vmem>>, vector<2x8x32xf32>,
    %c224 = arith.constant 224 : index
    %c0_49 = arith.constant 0 : index
    %129 = vector.load %arg4[%c224, %c0_49] : memref<320x96xbf16, #tpu.memory_space<vmem>>, vector<32x32xbf16>
    %130 = arith.truncf %124 : vector<8x32xf32> to vector<8x32xbf16>
    %cst_50 = arith.constant dense<0.000000e+00> : vector<8x32xf32>
    %131 = tpu.matmul %130, %129, %cst_50 {dimension_numbers = #tpu.dot_dimension_numbers<[1], [0], [0], [1], [0, 0, 1, 1], [], []>} : vector<8x32xbf16>, vector<32x32xbf16>, vector<8x32xf32> -> vector<8x32xf32>
    %c256 = arith.constant 256 : index
    %c0_51 = arith.constant 0 : index
    %132 = vector.load %arg4[%c256, %c0_51] : memref<320x96xbf16, #tpu.memory_space<vmem>>, vector<32x32xbf16>
    %133 = arith.truncf %44 : vector<8x32xf32> to vector<8x32xbf16>
    %cst_52 = arith.constant dense<0.000000e+00> : vector<8x32xf32>
    %134 = tpu.matmul %133, %132, %cst_52 {dimension_numbers = #tpu.dot_dimension_numbers<[1], [0], [0], [1], [0, 0, 1, 1], [], []>} : vector<8x32xbf16>, vector<32x32xbf16>, vector<8x32xf32> -> vector<8x32xf32>
    %135 = arith.addf %131, %134 : vector<8x32xf32>
    %c5 = arith.constant 5 : index
    %c0_53 = arith.constant 0 : index
    %136 = vector.load %arg5[%c5, %c0_53] : memref<8x96xf32, #tpu.memory_space<vmem>>, vector<1x32xf32>
    %137 = vector.broadcast %136 : vector<1x32xf32> to vector<8x32xf32>
    %138 = arith.addf %135, %137 : vector<8x32xf32>
    %139 = math.tanh %138 : vector<8x32xf32>
    %c288 = arith.constant 288 : index
    %c0_54 = arith.constant 0 : index
    %140 = vector.load %arg4[%c288, %c0_54] : memref<320x96xbf16, #tpu.memory_space<vmem>>, vector<32x16xbf16>
    %141 = arith.truncf %139 : vector<8x32xf32> to vector<8x32xbf16>
    %cst_55 = arith.constant dense<0.000000e+00> : vector<8x16xf32>
    %142 = tpu.matmul %141, %140, %cst_55 {dimension_numbers = #tpu.dot_dimension_numbers<[1], [0], [0], [1], [0, 0, 1, 1], [], []>} : vector<8x32xbf16>, vector<32x16xbf16>, vector<8x16xf32> -> vector<8x16xf32>
    %c6 = arith.constant 6 : index
    %c0_56 = arith.constant 0 : index
    %143 = vector.load %arg5[%c6, %c0_56] : memref<8x96xf32, #tpu.memory_space<vmem>>, vector<1x16xf32>
    %144 = vector.broadcast %143 : vector<1x16xf32> to vector<8x16xf32>
    %145 = arith.addf %142, %144 : vector<8x16xf32>
    %c0_57 = arith.constant 0 : index
    %c0_58 = arith.constant 0 : index
    %146 = vector.load %arg6[%c0_57, %c0_58] : memref<8x16xf32, #tpu.memory_space<vmem>>, vector<8x16xf32>
    tpu.vector_store %arg6[%c0_57, %c0_58], %145 {strides = array<i32>} : memref<8x16xf32, #tpu.memory_space<vmem>>, vector<8x16xf32>,
    return
  }
}

</mosaic_0001>

<llo_original>
// kernel: attn_decoder_forward.1
$region0: #{attn_decoder_forward.1}
  #allocation0 [shape = 'u32[]', space=smem, size = 0x4, offset = 0x4, fixed_abs, tag = 'smem constant byte address 0x4 - core index']
  #allocation1 [shape = 'u32[72,128]{1,0:T(1,128)}', space=vmem, size = 0x9000, scoped, tag = 'internal scratch']
  %s0 = inlined_call_operand.vmem [shape: f32[8,32], index: 0, kind: input, shape index: {}]
  %s1 = inlined_call_operand.hbm [shape: f32[2,8,32], index: 1, kind: input, shape index: {}, may-alias: {1,7}]
  %s2 = inlined_call_operand.vmem [shape: f32[8,8,32], index: 2, kind: input, shape index: {}]
  %s3 = inlined_call_operand.vmem [shape: f32[8,8,1], index: 3, kind: input, shape index: {}]
  %s4 = inlined_call_operand.vmem [shape: bf16[320,96], index: 4, kind: input, shape index: {}]
  %s5 = inlined_call_operand.vmem [shape: f32[8,96], index: 5, kind: input, shape index: {}]
  %s6 = inlined_call_operand.hbm [shape: f32[8,16], index: 6, kind: output, shape index: {0}]
  %s7 = inlined_call_operand.hbm [shape: f32[2,8,32], index: 7, kind: output, shape index: {1}, may-alias: {1,7}]
  %8 = xla_tuple %s6, %s7
  %s9 = sld [smem:[#allocation0]]
  $region46: #{attn_decoder_forward.1} parent=0
    _
  %s11 = ssub.s32 1, %s9
  %s12 = scalar_select 0, %s11, %s9
  $region1: #{attn_decoder_forward.1} parent=0
    #allocation2 [shape = 'u8[8192]{0}', space=vmem, size = 0x2000, scoped, tag = 'input window, operand 1, single buffered']
    #allocation3 [shape = 's32[1]{0}', space=sflag, size = 0x4, scoped, tag = 'scoped memory for attn_decoder_forward.1']
    #allocation4 [shape = 's32[1]{0}', space=sflag, size = 0x4, scoped, tag = 'scoped memory for attn_decoder_forward.1']
    #allocation5 [shape = 'u8[4096]{0}', space=vmem, size = 0x1000, scoped, tag = 'output window, operand 0, single buffered']
    #allocation6 [shape = 'u8[8192]{0}', space=vmem, size = 0x2000, scoped, tag = 'output window, operand 1, single buffered']
    #allocation7 [shape = 's32[1]{0}', space=sflag, size = 0x4, scoped, tag = 'scoped memory for attn_decoder_forward.1']
    %13 = vsyncpa [#allocation3], 0
    %14 = vsyncpa [#allocation4], 0
    %15 = vsyncpa [#allocation7], 0
    // Predicated region
    $region2: #{attn_decoder_forward.1} parent=1 // pred_check
      _
    $region3: #{attn_decoder_forward.1} parent=1 // pred_check_branch
      %17 = sbr.rel (0) target = $region5
    $region4: #{attn_decoder_forward.1} parent=1 // pred_region
      _
    $region5: #{attn_decoder_forward.1} parent=1 // pred_fallthru
      _
    // Predicated region
    $region6: #{attn_decoder_forward.1} parent=1 // pred_check
      _
    $region7: #{attn_decoder_forward.1} parent=1 // pred_check_branch
      %19 = sbr.rel (0) target = $region9
    $region8: #{attn_decoder_forward.1} parent=1 // pred_region
      %21 = vsyncadd [#allocation3], 0
      %s22 = sshll.u32 %s1, 4
      %s23 = int_to_ptr.hbm [resolvable:$true] %s22
      %s24 = sshll.u32 [#allocation2], 4
      %s25 = int_to_ptr.vmem [resolvable:$true] %s24
      %30 = dma.hbm_to_vmem [thread:$0]  %s23, 256, %s25, [#allocation3], 128, 128, 8
    $region9: #{attn_decoder_forward.1} parent=1 // pred_fallthru
      _
    // Predicated region
    $region10: #{attn_decoder_forward.1} parent=1 // pred_check
      _
    $region11: #{attn_decoder_forward.1} parent=1 // pred_check_branch
      %32 = sbr.rel (0) target = $region13
    $region12: #{attn_decoder_forward.1} parent=1 // pred_region
      _
    $region13: #{attn_decoder_forward.1} parent=1 // pred_fallthru
      _
    // Predicated region
    $region14: #{attn_decoder_forward.1} parent=1 // pred_check
      _
    $region15: #{attn_decoder_forward.1} parent=1 // pred_check_branch
      %34 = sbr.rel (0) target = $region17
    $region16: #{attn_decoder_forward.1} parent=1 // pred_region
      _
    $region17: #{attn_decoder_forward.1} parent=1 // pred_fallthru
      _
    // Predicated region
    $region18: #{attn_decoder_forward.1} parent=1 // pred_check
      _
    $region19: #{attn_decoder_forward.1} parent=1 // pred_check_branch
      %36 = sbr.rel (0) target = $region21
    $region20: #{attn_decoder_forward.1} parent=1 // pred_region
      _
    $region21: #{attn_decoder_forward.1} parent=1 // pred_fallthru
      _
    // Predicated region
    $region22: #{attn_decoder_forward.1} parent=1 // pred_check
      _
    $region23: #{attn_decoder_forward.1} parent=1 // pred_check_branch
      %38 = sbr.rel (0) target = $region25
    $region24: #{attn_decoder_forward.1} parent=1 // pred_region
      _
    $region25: #{attn_decoder_forward.1} parent=1 // pred_fallthru
      _
    // Predicated region
    $region26: #{attn_decoder_forward.1} parent=1 // pred_check
      _
    $region27: #{attn_decoder_forward.1} parent=1 // pred_check_branch
      %40 = sbr.rel (0) target = $region29
    $region28: #{attn_decoder_forward.1} parent=1 // pred_region
      %42 = dma.done [#allocation3], 256
    $region29: #{attn_decoder_forward.1} parent=1 // pred_fallthru
      _
    %v44 = vld [vmem:[%s0] sm:$0xff]
    %v45 = vld [vmem:[#allocation2] sm:$0xff]
    %s46 = scalar_lea.vmem [#allocation2], 8
    %v47 = vld [vmem:[%s46] sm:$0xff]
    %v48 = vld [vmem:[%s2] sm:$0xff]
    %v49 = vld [vmem:[%s2 + $0x8] sm:$0xff]
    %v50 = vld [vmem:[%s2 + $0x10] sm:$0xff]
    %v51 = vld [vmem:[%s2 + $0x18] sm:$0xff]
    %v52 = vld [vmem:[%s2 + $0x20] sm:$0xff]
    %v53 = vld [vmem:[%s2 + $0x28] sm:$0xff]
    %v54 = vld [vmem:[%s2 + $0x30] sm:$0xff]
    %v55 = vld [vmem:[%s2 + $0x38] sm:$0xff]
    %v56 = vld [vmem:[%s4] sm:$0xf]
    %v57 = vld [vmem:[%s4 + $0x4] sm:$0xf]
    %v58 = vld [vmem:[%s4 + $0x8] sm:$0xf]
    %v59 = vld [vmem:[%s4 + $0xc] sm:$0xf]
    %v60 = vpack.c.bf16 %v47, %v47
    %v61 = vld [vmem:[%s5] sm:$0x1]
    %v62 = vperm.slane %v61, 0
    %v67 = vunpack.c.l.b16 %v56
    %v68 = vunpack.c.l.b16 %v57
    %v69 = vunpack.c.l.b16 %v58
    %v70 = vunpack.c.l.b16 %v59
    %v71 = vpack.c.b16 %v68, %v67
    %v72 = vpack.c.b16 %v70, %v69
    %vm75 = vcmask 261120
    %v77 = vsel %vm75, %v60, 0
    %79 = vmatpush.bf16.msra.mxu0 0
    %80 = vmatpush.bf16.msra.mxu0 0
    %81 = vmatpush.bf16.msra.mxu0 0
    %82 = vmatpush.bf16.msra.mxu0 0
    %83 = vmatpush.bf16.msra.mxu0 0
    %84 = vmatpush.bf16.msra.mxu0 0
    %85 = vmatpush.bf16.msra.mxu0 %v72
    %86 = vmatpush.bf16.msra.mxu0 %v71
    %87 = vmatmul.bf16.gmra.mxu0 %v77
    %v88 = vpop.f32.mrf.mxu0
    %v89 = vadd.f32 %v62, %v88
    %v90 = vpop.f32.mrf.mxu0
    %91 = vdwg.mxu0
    %v92 = vld [vmem:[%s4 + $0x10] sm:$0xf]
    %v93 = vld [vmem:[%s4 + $0x14] sm:$0xf]
    %v94 = vld [vmem:[%s4 + $0x18] sm:$0xf]
    %v95 = vld [vmem:[%s4 + $0x1c] sm:$0xf]
    %v96 = vpack.c.bf16 %v49, %v48
    %v97 = vpack.c.bf16 %v51, %v50
    %v98 = vpack.c.bf16 %v53, %v52
    %v99 = vpack.c.bf16 %v55, %v54
    %v104 = vunpack.c.l.b16 %v92
    %v105 = vunpack.c.l.b16 %v93
    %v106 = vunpack.c.l.b16 %v94
    %v107 = vunpack.c.l.b16 %v95
    %v108 = vpack.c.b16 %v105, %v104
    %v109 = vpack.c.b16 %v107, %v106
    %v113 = vsel %vm75, %v96, 0
    %v116 = vsel %vm75, %v97, 0
    %v119 = vsel %vm75, %v98, 0
    %v122 = vsel %vm75, %v99, 0
    %124 = vmatpush.bf16.msra.mxu0 0
    %125 = vmatpush.bf16.msra.mxu0 0
    %126 = vmatpush.bf16.msra.mxu0 0
    %127 = vmatpush.bf16.msra.mxu0 0
    %128 = vmatpush.bf16.msra.mxu0 0
    %129 = vmatpush.bf16.msra.mxu0 0
    %130 = vmatpush.bf16.msra.mxu0 %v109
    %131 = vmatpush.bf16.msra.mxu0 %v108
    %132 = vmatmul.bf16.gmra.mxu0 %v113
    %v133 = vpop.f32.mrf.mxu0
    %v134 = vadd.f32 0.0, %v133
    %v135 = vpop.f32.mrf.mxu0
    %v136 = vadd.f32 0.0, %v135
    %137 = vmatmul.bf16.gmra.mxu0 %v116
    %v138 = vpop.f32.mrf.mxu0
    %v139 = vadd.f32 0.0, %v138
    %v140 = vpop.f32.mrf.mxu0
    %v141 = vadd.f32 0.0, %v140
    %142 = vmatmul.bf16.gmra.mxu0 %v119
    %v143 = vpop.f32.mrf.mxu0
    %v144 = vadd.f32 0.0, %v143
    %v145 = vpop.f32.mrf.mxu0
    %v146 = vadd.f32 0.0, %v145
    %147 = vmatmul.bf16.gmra.mxu0 %v122
    %v148 = vpop.f32.mrf.mxu0
    %v149 = vadd.f32 0.0, %v148
    %v150 = vpop.f32.mrf.mxu0
    %v151 = vadd.f32 0.0, %v150
    %152 = vdwg.mxu0
    %v153 = vadd.f32 %v134, %v89
    %v154 = vadd.f32 %v136, %v89
    %v155 = vadd.f32 %v139, %v89
    %v156 = vadd.f32 %v141, %v89
    %v157 = vadd.f32 %v144, %v89
    %v158 = vadd.f32 %v146, %v89
    %v159 = vadd.f32 %v149, %v89
    %v160 = vadd.f32 %v151, %v89
    %v161 = vtanh.pop %v153
    %v162 = vtanh.pop %v154
    %v163 = vtanh.pop %v155
    %v164 = vtanh.pop %v156
    %v165 = vtanh.pop %v157
    %v166 = vtanh.pop %v158
    %v167 = vtanh.pop %v159
    %v168 = vtanh.pop %v160
    %v169 = vld [vmem:[%s5 + $0x7] sm:$0x1]
    %v170 = vperm.slane %v169, 0
    %v171 = vmul.f32 %v161, %v170
    %v172 = vmul.f32 %v162, %v170
    %v173 = vmul.f32 %v163, %v170
    %v174 = vmul.f32 %v164, %v170
    %v175 = vmul.f32 %v165, %v170
    %v176 = vmul.f32 %v166, %v170
    %v177 = vmul.f32 %v167, %v170
    %v178 = vmul.f32 %v168, %v170
    %v179 = vsel %vm75, %v171, 0.0
    %180 = vadd.xlane.f32.xlu0 %v179
    %v181 = vpop.xlane.xlu0 %180
    %v182 = vsel %vm75, %v172, 0.0
    %183 = vadd.xlane.f32.xlu0 %v182
    %v184 = vpop.xlane.xlu0 %183
    %v185 = vsel %vm75, %v173, 0.0
    %186 = vadd.xlane.f32.xlu0 %v185
    %v187 = vpop.xlane.xlu0 %186
    %v188 = vsel %vm75, %v174, 0.0
    %189 = vadd.xlane.f32.xlu0 %v188
    %v190 = vpop.xlane.xlu0 %189
    %v191 = vsel %vm75, %v175, 0.0
    %192 = vadd.xlane.f32.xlu0 %v191
    %v193 = vpop.xlane.xlu0 %192
    %v194 = vsel %vm75, %v176, 0.0
    %195 = vadd.xlane.f32.xlu0 %v194
    %v196 = vpop.xlane.xlu0 %195
    %v197 = vsel %vm75, %v177, 0.0
    %198 = vadd.xlane.f32.xlu0 %v197
    %v199 = vpop.xlane.xlu0 %198
    %v200 = vsel %vm75, %v178, 0.0
    %201 = vadd.xlane.f32.xlu0 %v200
    %v202 = vpop.xlane.xlu0 %201
    %v203 = vld [vmem:[%s3] sm:$0xff]
    %v204 = vld [vmem:[%s3 + $0x8] sm:$0xff]
    %v205 = vld [vmem:[%s3 + $0x10] sm:$0xff]
    %v206 = vld [vmem:[%s3 + $0x18] sm:$0xff]
    %v207 = vld [vmem:[%s3 + $0x20] sm:$0xff]
    %v208 = vld [vmem:[%s3 + $0x28] sm:$0xff]
    %v209 = vld [vmem:[%s3 + $0x30] sm:$0xff]
    %v210 = vld [vmem:[%s3 + $0x38] sm:$0xff]
    %vm211 = vcmp.gt.f32.partialorder %v203, 0.5
    %vm212 = vcmp.gt.f32.partialorder %v204, 0.5
    %vm213 = vcmp.gt.f32.partialorder %v205, 0.5
    %vm214 = vcmp.gt.f32.partialorder %v206, 0.5
    %vm215 = vcmp.gt.f32.partialorder %v207, 0.5
    %vm216 = vcmp.gt.f32.partialorder %v208, 0.5
    %vm217 = vcmp.gt.f32.partialorder %v209, 0.5
    %vm218 = vcmp.gt.f32.partialorder %v210, 0.5
    %v219 = vsel %vm211, -1e+12, %v181
    %v220 = vsel %vm212, -1e+12, %v184
    %v221 = vsel %vm213, -1e+12, %v187
    %v222 = vsel %vm214, -1e+12, %v190
    %v223 = vsel %vm215, -1e+12, %v193
    %v224 = vsel %vm216, -1e+12, %v196
    %v225 = vsel %vm217, -1e+12, %v199
    %v226 = vsel %vm218, -1e+12, %v202
    %vm227 = vcmask 7168
    %v228 = vsel %vm227, %v219, -inf
    %v229 = vsel %vm227, %v220, -inf
    %v230 = vsel %vm227, %v221, -inf
    %v231 = vsel %vm227, %v222, -inf
    %v232 = vsel %vm227, %v223, -inf
    %v233 = vmax.f32 %v228, %v232
    %v234 = vsel %vm227, %v224, -inf
    %v235 = vmax.f32 %v229, %v234
    %v236 = vsel %vm227, %v225, -inf
    %v237 = vmax.f32 %v230, %v236
    %v238 = vsel %vm227, %v226, -inf
    %v239 = vmax.f32 %v231, %v238
    %v240 = vmax.f32 %v233, %v235
    %v241 = vmax.f32 %v237, %v239
    %v242 = vmax.f32 %v240, %v241
    %v243 = vsub.f32 %v219, %v242
    %v244 = vsub.f32 %v220, %v242
    %v245 = vsub.f32 %v221, %v242
    %v246 = vsub.f32 %v222, %v242
    %v247 = vsub.f32 %v223, %v242
    %v248 = vsub.f32 %v224, %v242
    %v249 = vsub.f32 %v225, %v242
    %v250 = vsub.f32 %v226, %v242
    %v251 = vmul.f32 %v243, 1.442695
    %v252 = vpow.pop %v251
    %v253 = vmul.f32 %v244, 1.442695
    %v254 = vpow.pop %v253
    %v255 = vmul.f32 %v245, 1.442695
    %v256 = vpow.pop %v255
    %v257 = vmul.f32 %v246, 1.442695
    %v258 = vpow.pop %v257
    %v259 = vmul.f32 %v247, 1.442695
    %v260 = vpow.pop %v259
    %v261 = vmul.f32 %v248, 1.442695
    %v262 = vpow.pop %v261
    %v263 = vmul.f32 %v249, 1.442695
    %v264 = vpow.pop %v263
    %v265 = vmul.f32 %v250, 1.442695
    %v266 = vpow.pop %v265
    %v267 = vsel %vm227, %v252, 0.0
    %v268 = vsel %vm227, %v254, 0.0
    %v269 = vadd.f32 %v267, %v268
    %v270 = vsel %vm227, %v256, 0.0
    %v271 = vadd.f32 %v269, %v270
    %v272 = vsel %vm227, %v258, 0.0
    %v273 = vadd.f32 %v271, %v272
    %v274 = vsel %vm227, %v260, 0.0
    %v275 = vadd.f32 %v273, %v274
    %v276 = vsel %vm227, %v262, 0.0
    %v277 = vadd.f32 %v275, %v276
    %v278 = vsel %vm227, %v264, 0.0
    %v279 = vadd.f32 %v277, %v278
    %v280 = vsel %vm227, %v266, 0.0
    %v281 = vadd.f32 %v279, %v280
    %v282 = vrcp.pop %v281
    %v283 = vmul.f32 %v252, %v282
    %v284 = vmul.f32 %v254, %v282
    %v285 = vmul.f32 %v256, %v282
    %v286 = vmul.f32 %v258, %v282
    %v287 = vmul.f32 %v260, %v282
    %v288 = vmul.f32 %v262, %v282
    %v289 = vmul.f32 %v264, %v282
    %v290 = vmul.f32 %v266, %v282
    %292 = vset.pattern.permute.xlu0 0
    %293 = vperm.xlu0 %292, %v283
    %v294 = vpop.permute.xlu0 %293
    %297 = vset.pattern.permute.xlu0 0
    %298 = vperm.xlu0 %297, %v284
    %v299 = vpop.permute.xlu0 %298
    %302 = vset.pattern.permute.xlu0 0
    %303 = vperm.xlu0 %302, %v285
    %v304 = vpop.permute.xlu0 %303
    %307 = vset.pattern.permute.xlu0 0
    %308 = vperm.xlu0 %307, %v286
    %v309 = vpop.permute.xlu0 %308
    %312 = vset.pattern.permute.xlu0 0
    %313 = vperm.xlu0 %312, %v287
    %v314 = vpop.permute.xlu0 %313
    %317 = vset.pattern.permute.xlu0 0
    %318 = vperm.xlu0 %317, %v288
    %v319 = vpop.permute.xlu0 %318
    %322 = vset.pattern.permute.xlu0 0
    %323 = vperm.xlu0 %322, %v289
    %v324 = vpop.permute.xlu0 %323
    %327 = vset.pattern.permute.xlu0 0
    %328 = vperm.xlu0 %327, %v290
    %v329 = vpop.permute.xlu0 %328
    %v331 = vmul.f32 %v294, %v48
    %v332 = vmul.f32 %v299, %v49
    %v333 = vmul.f32 %v304, %v50
    %v334 = vmul.f32 %v309, %v51
    %v335 = vmul.f32 %v314, %v52
    %v336 = vmul.f32 %v319, %v53
    %v337 = vmul.f32 %v324, %v54
    %v338 = vmul.f32 %v329, %v55
    %v339 = vsel %vm75, %v331, 0.0
    %v340 = vsel %vm75, %v332, 0.0
    %v341 = vadd.f32 %v339, %v340
    %v342 = vsel %vm75, %v333, 0.0
    %v343 = vadd.f32 %v341, %v342
    %v344 = vsel %vm75, %v334, 0.0
    %v345 = vadd.f32 %v343, %v344
    %v346 = vsel %vm75, %v335, 0.0
    %v347 = vadd.f32 %v345, %v346
    %v348 = vsel %vm75, %v336, 0.0
    %v349 = vadd.f32 %v347, %v348
    %v350 = vsel %vm75, %v337, 0.0
    %v351 = vadd.f32 %v349, %v350
    %v352 = vsel %vm75, %v338, 0.0
    %v353 = vadd.f32 %v351, %v352
    %v354 = vld [vmem:[%s4 + $0x20] sm:$0xf]
    %v355 = vld [vmem:[%s4 + $0x24] sm:$0xf]
    %v356 = vld [vmem:[%s4 + $0x28] sm:$0xf]
    %v357 = vld [vmem:[%s4 + $0x2c] sm:$0xf]
    %v358 = vpack.c.bf16 %v44, %v44
    %v359 = vld [vmem:[%s4 + $0x30] sm:$0xf]
    %v360 = vld [vmem:[%s4 + $0x34] sm:$0xf]
    %v361 = vld [vmem:[%s4 + $0x38] sm:$0xf]
    %v362 = vld [vmem:[%s4 + $0x3c] sm:$0xf]
    %v363 = vpack.c.bf16 %v353, %v353
    %v368 = vunpack.c.l.b16 %v359
    %v369 = vunpack.c.l.b16 %v360
    %v370 = vunpack.c.l.b16 %v361
    %v371 = vunpack.c.l.b16 %v362
    %v372 = vpack.c.b16 %v369, %v368
    %v373 = vpack.c.b16 %v371, %v370
    %v377 = vsel %vm75, %v363, 0
    %379 = vmatpush.bf16.msra.mxu0 0
    %380 = vmatpush.bf16.msra.mxu0 0
    %381 = vmatpush.bf16.msra.mxu0 0
    %382 = vmatpush.bf16.msra.mxu0 0
    %383 = vmatpush.bf16.msra.mxu0 0
    %384 = vmatpush.bf16.msra.mxu0 0
    %385 = vmatpush.bf16.msra.mxu0 %v373
    %386 = vmatpush.bf16.msra.mxu0 %v372
    %387 = vmatmul.bf16.gmra.mxu0 %v377
    %v388 = vpop.f32.mrf.mxu0
    %v389 = vadd.f32 0.0, %v388
    %v390 = vpop.f32.mrf.mxu0
    %391 = vdwg.mxu0
    %v396 = vunpack.c.l.b16 %v354
    %v397 = vunpack.c.l.b16 %v355
    %v398 = vunpack.c.l.b16 %v356
    %v399 = vunpack.c.l.b16 %v357
    %v400 = vpack.c.b16 %v397, %v396
    %v401 = vpack.c.b16 %v399, %v398
    %v405 = vsel %vm75, %v358, 0
    %407 = vmatpush.bf16.msra.mxu0 0
    %408 = vmatpush.bf16.msra.mxu0 0
    %409 = vmatpush.bf16.msra.mxu0 0
    %410 = vmatpush.bf16.msra.mxu0 0
    %411 = vmatpush.bf16.msra.mxu0 0
    %412 = vmatpush.bf16.msra.mxu0 0
    %413 = vmatpush.bf16.msra.mxu0 %v401
    %414 = vmatpush.bf16.msra.mxu0 %v400
    %415 = vmatmul.bf16.gmra.mxu0 %v405
    %v416 = vpop.f32.mrf.mxu0
    %v417 = vadd.f32 %v389, %v416
    %v418 = vpop.f32.mrf.mxu0
    %419 = vdwg.mxu0
    %v420 = vld [vmem:[%s5 + $0x1] sm:$0x1]
    %v421 = vperm.slane %v420, 0
    %v422 = vadd.f32 %v417, %v421
    %v423 = vld [vmem:[%s4 + $0x40] sm:$0xf]
    %v424 = vld [vmem:[%s4 + $0x44] sm:$0xf]
    %v425 = vld [vmem:[%s4 + $0x48] sm:$0xf]
    %v426 = vld [vmem:[%s4 + $0x4c] sm:$0xf]
    %v427 = vpack.c.bf16 %v45, %v45
    %v428 = vld [vmem:[%s5 + $0x2] sm:$0x1]
    %v429 = vperm.slane %v428, 0
    %v434 = vunpack.c.l.b16 %v423
    %v435 = vunpack.c.l.b16 %v424
    %v436 = vunpack.c.l.b16 %v425
    %v437 = vunpack.c.l.b16 %v426
    %v438 = vpack.c.b16 %v435, %v434
    %v439 = vpack.c.b16 %v437, %v436
    %v443 = vsel %vm75, %v427, 0
    %445 = vmatpush.bf16.msra.mxu0 0
    %446 = vmatpush.bf16.msra.mxu0 0
    %447 = vmatpush.bf16.msra.mxu0 0
    %448 = vmatpush.bf16.msra.mxu0 0
    %449 = vmatpush.bf16.msra.mxu0 0
    %450 = vmatpush.bf16.msra.mxu0 0
    %451 = vmatpush.bf16.msra.mxu0 %v439
    %452 = vmatpush.bf16.msra.mxu0 %v438
    %453 = vmatmul.bf16.gmra.mxu0 %v443
    %v454 = vpop.f32.mrf.mxu0
    %v455 = vadd.f32 %v429, %v454
    %v456 = vpop.f32.mrf.mxu0
    %457 = vdwg.mxu0
    %v458 = vadd.f32 %v422, %v455
    %v459 = vxor.u32 %v458, 2147483648
    %v460 = vmul.f32 %v459, 1.442695
    %v461 = vpow.pop %v460
    %v462 = vadd.f32 %v461, 1.0
    %v463 = vrcp.pop %v462
    %v464 = vmul.f32 %v462, %v463
    %v465 = vsub.f32 1.0, %v464
    %v466 = vmul.f32 %v463, %v465
    %v467 = vadd.f32 %v463, %v466
    %vm468 = vweird.f32 %v462
    %vm469 = vweird.f32 %v463
    %vm470 = vmor %vm468, %vm469
    %v471 = vsel %vm470, %v463, %v467
    %v472 = vand.u32 2147483647, %v462
    %vm473 = vcmp.eq.f32.partialorder %v472, 8.507059e+37
    %v474 = vand.u32 %v462, 2147483648
    %v475 = vor.u32 1.1754944e-38, %v474
    %v476 = vsel %vm473, %v475, %v471
    %v477 = vmul.f32 1.0, %v476
    %479 = vrot.lane.b32.xlu0 %v455, 64
    %v480 = vpop.permute.xlu0 %479
    %v482 = vmul.f32 %v477, %v480
    %484 = vrot.lane.b32.xlu0 %v482, 64
    %v485 = vpop.permute.xlu0 %484
    %v487 = vadd.f32 %v422, %v485
    %v488 = vtanh.pop %v487
    %v489 = vsub.f32 1.0, %v477
    %491 = vrot.lane.b32.xlu0 %v488, 96
    %v492 = vpop.permute.xlu0 %491
    %v494 = vmul.f32 %v489, %v492
    %496 = vrot.lane.b32.xlu0 %v45, 32
    %v497 = vpop.permute.xlu0 %496
    %v499 = vmul.f32 %v477, %v497
    %v500 = vadd.f32 %v494, %v499
    %v501 = vld [vmem:[%s4 + $0x50] sm:$0xf]
    %v502 = vld [vmem:[%s4 + $0x54] sm:$0xf]
    %v503 = vld [vmem:[%s4 + $0x58] sm:$0xf]
    %v504 = vld [vmem:[%s4 + $0x5c] sm:$0xf]
    %v505 = vpack.c.bf16 %v500, %v500
    %v506 = vld [vmem:[%s5 + $0x3] sm:$0x1]
    %v507 = vperm.slane %v506, 0
    %509 = vrot.lane.b32.xlu0 %v505, 96
    %v510 = vpop.permute.xlu0 %509
    %v515 = vunpack.c.l.b16 %v501
    %v516 = vunpack.c.l.b16 %v502
    %v517 = vunpack.c.l.b16 %v503
    %v518 = vunpack.c.l.b16 %v504
    %v519 = vpack.c.b16 %v516, %v515
    %v520 = vpack.c.b16 %v518, %v517
    %v524 = vsel %vm75, %v510, 0
    %526 = vmatpush.bf16.msra.mxu0 0
    %527 = vmatpush.bf16.msra.mxu0 0
    %528 = vmatpush.bf16.msra.mxu0 0
    %529 = vmatpush.bf16.msra.mxu0 0
    %530 = vmatpush.bf16.msra.mxu0 0
    %531 = vmatpush.bf16.msra.mxu0 0
    %532 = vmatpush.bf16.msra.mxu0 %v520
    %533 = vmatpush.bf16.msra.mxu0 %v519
    %534 = vmatmul.bf16.gmra.mxu0 %v524
    %v535 = vpop.f32.mrf.mxu0
    %v536 = vadd.f32 %v507, %v535
    %v537 = vpop.f32.mrf.mxu0
    %538 = vdwg.mxu0
    %v539 = vld [vmem:[%s4 + $0x60] sm:$0xf]
    %v540 = vld [vmem:[%s4 + $0x64] sm:$0xf]
    %v541 = vld [vmem:[%s4 + $0x68] sm:$0xf]
    %v542 = vld [vmem:[%s4 + $0x6c] sm:$0xf]
    %v543 = vld [vmem:[%s5 + $0x4] sm:$0x1]
    %v544 = vperm.slane %v543, 0
    %v549 = vunpack.c.l.b16 %v539
    %v550 = vunpack.c.l.b16 %v540
    %v551 = vunpack.c.l.b16 %v541
    %v552 = vunpack.c.l.b16 %v542
    %v553 = vpack.c.b16 %v550, %v549
    %v554 = vpack.c.b16 %v552, %v551
    %557 = vmatpush.bf16.msra.mxu0 0
    %558 = vmatpush.bf16.msra.mxu0 0
    %559 = vmatpush.bf16.msra.mxu0 0
    %560 = vmatpush.bf16.msra.mxu0 0
    %561 = vmatpush.bf16.msra.mxu0 0
    %562 = vmatpush.bf16.msra.mxu0 0
    %563 = vmatpush.bf16.msra.mxu0 %v554
    %564 = vmatpush.bf16.msra.mxu0 %v553
    %565 = vmatmul.bf16.gmra.mxu0 %v77
    %v566 = vpop.f32.mrf.mxu0
    %v567 = vadd.f32 %v544, %v566
    %v568 = vpop.f32.mrf.mxu0
    %569 = vdwg.mxu0
    %v570 = vadd.f32 %v536, %v567
    %v571 = vxor.u32 %v570, 2147483648
    %v572 = vmul.f32 %v571, 1.442695
    %v573 = vpow.pop %v572
    %v574 = vadd.f32 %v573, 1.0
    %v575 = vrcp.pop %v574
    %v576 = vmul.f32 %v574, %v575
    %v577 = vsub.f32 1.0, %v576
    %v578 = vmul.f32 %v575, %v577
    %v579 = vadd.f32 %v575, %v578
    %vm580 = vweird.f32 %v574
    %vm581 = vweird.f32 %v575
    %vm582 = vmor %vm580, %vm581
    %v583 = vsel %vm582, %v575, %v579
    %v584 = vand.u32 2147483647, %v574
    %vm585 = vcmp.eq.f32.partialorder %v584, 8.507059e+37
    %v586 = vand.u32 %v574, 2147483648
    %v587 = vor.u32 1.1754944e-38, %v586
    %v588 = vsel %vm585, %v587, %v583
    %v589 = vmul.f32 1.0, %v588
    %591 = vrot.lane.b32.xlu0 %v567, 64
    %v592 = vpop.permute.xlu0 %591
    %v594 = vmul.f32 %v589, %v592
    %596 = vrot.lane.b32.xlu0 %v594, 64
    %v597 = vpop.permute.xlu0 %596
    %v599 = vadd.f32 %v536, %v597
    %v600 = vtanh.pop %v599
    %v601 = vsub.f32 1.0, %v589
    %603 = vrot.lane.b32.xlu0 %v600, 96
    %v604 = vpop.permute.xlu0 %603
    %v606 = vmul.f32 %v601, %v604
    %608 = vrot.lane.b32.xlu0 %v47, 32
    %v609 = vpop.permute.xlu0 %608
    %v611 = vmul.f32 %v589, %v609
    %v612 = vadd.f32 %v606, %v611
    %615 = vrot.lane.b32.xlu0 %v500, 96
    %v616 = vpop.permute.xlu0 %615
    %617 = vrot.lane.b32.xlu0 %v612, 96
    %v618 = vpop.permute.xlu0 %617
    %621 = vst.msk [vmem:[#allocation6] sm:$0xff] %vm75, %v616
    %622 = vst.msk [vmem:[#allocation6 + $0x8] sm:$0xff] %vm75, %v618
    %v623 = vld [vmem:[%s4 + $0x70] sm:$0xf]
    %v624 = vld [vmem:[%s4 + $0x74] sm:$0xf]
    %v625 = vld [vmem:[%s4 + $0x78] sm:$0xf]
    %v626 = vld [vmem:[%s4 + $0x7c] sm:$0xf]
    %v627 = vpack.c.bf16 %v612, %v612
    %v628 = vld [vmem:[%s4 + $0x80] sm:$0xf]
    %v629 = vld [vmem:[%s4 + $0x84] sm:$0xf]
    %v630 = vld [vmem:[%s4 + $0x88] sm:$0xf]
    %v631 = vld [vmem:[%s4 + $0x8c] sm:$0xf]
    %v636 = vunpack.c.l.b16 %v628
    %v637 = vunpack.c.l.b16 %v629
    %v638 = vunpack.c.l.b16 %v630
    %v639 = vunpack.c.l.b16 %v631
    %v640 = vpack.c.b16 %v637, %v636
    %v641 = vpack.c.b16 %v639, %v638
    %644 = vmatpush.bf16.msra.mxu0 0
    %645 = vmatpush.bf16.msra.mxu0 0
    %646 = vmatpush.bf16.msra.mxu0 0
    %647 = vmatpush.bf16.msra.mxu0 0
    %648 = vmatpush.bf16.msra.mxu0 0
    %649 = vmatpush.bf16.msra.mxu0 0
    %650 = vmatpush.bf16.msra.mxu0 %v641
    %651 = vmatpush.bf16.msra.mxu0 %v640
    %652 = vmatmul.bf16.gmra.mxu0 %v377
    %v653 = vpop.f32.mrf.mxu0
    %v654 = vadd.f32 0.0, %v653
    %v655 = vpop.f32.mrf.mxu0
    %656 = vdwg.mxu0
    %658 = vrot.lane.b32.xlu0 %v627, 96
    %v659 = vpop.permute.xlu0 %658
    %v664 = vunpack.c.l.b16 %v623
    %v665 = vunpack.c.l.b16 %v624
    %v666 = vunpack.c.l.b16 %v625
    %v667 = vunpack.c.l.b16 %v626
    %v668 = vpack.c.b16 %v665, %v664
    %v669 = vpack.c.b16 %v667, %v666
    %v673 = vsel %vm75, %v659, 0
    %675 = vmatpush.bf16.msra.mxu0 0
    %676 = vmatpush.bf16.msra.mxu0 0
    %677 = vmatpush.bf16.msra.mxu0 0
    %678 = vmatpush.bf16.msra.mxu0 0
    %679 = vmatpush.bf16.msra.mxu0 0
    %680 = vmatpush.bf16.msra.mxu0 0
    %681 = vmatpush.bf16.msra.mxu0 %v669
    %682 = vmatpush.bf16.msra.mxu0 %v668
    %683 = vmatmul.bf16.gmra.mxu0 %v673
    %v684 = vpop.f32.mrf.mxu0
    %v685 = vadd.f32 %v654, %v684
    %v686 = vpop.f32.mrf.mxu0
    %687 = vdwg.mxu0
    %v688 = vld [vmem:[%s5 + $0x5] sm:$0x1]
    %v689 = vperm.slane %v688, 0
    %v690 = vadd.f32 %v685, %v689
    %v691 = vtanh.pop %v690
    %v692 = vld [vmem:[%s4 + $0x90] sm:$0xf]
    %v693 = vld [vmem:[%s4 + $0x94] sm:$0xf]
    %v694 = vld [vmem:[%s4 + $0x98] sm:$0xf]
    %v695 = vld [vmem:[%s4 + $0x9c] sm:$0xf]
    %v696 = vpack.c.bf16 %v691, %v691
    %v697 = vld [vmem:[%s5 + $0x6] sm:$0x1]
    %v698 = vperm.slane %v697, 0
    %v703 = vunpack.c.l.b16 %v692
    %v704 = vunpack.c.l.b16 %v693
    %v705 = vunpack.c.l.b16 %v694
    %v706 = vunpack.c.l.b16 %v695
    %v707 = vpack.c.b16 %v704, %v703
    %v708 = vpack.c.b16 %v706, %v705
    %v712 = vsel %vm75, %v696, 0
    %714 = vmatpush.bf16.msra.mxu0 0
    %715 = vmatpush.bf16.msra.mxu0 0
    %716 = vmatpush.bf16.msra.mxu0 0
    %717 = vmatpush.bf16.msra.mxu0 0
    %718 = vmatpush.bf16.msra.mxu0 0
    %719 = vmatpush.bf16.msra.mxu0 0
    %720 = vmatpush.bf16.msra.mxu0 %v708
    %721 = vmatpush.bf16.msra.mxu0 %v707
    %722 = vmatmul.bf16.gmra.mxu0 %v712
    %v723 = vpop.f32.mrf.mxu0
    %v724 = vadd.f32 %v698, %v723
    %v725 = vpop.f32.mrf.mxu0
    %726 = vdwg.mxu0
    %vm727 = vcmask 130048
    %728 = vst.msk [vmem:[#allocation5] sm:$0xff] %vm727, %v724
    // Predicated region
    $region30: #{attn_decoder_forward.1} parent=1 // pred_check
      _
    $region31: #{attn_decoder_forward.1} parent=1 // pred_check_branch
      %730 = sbr.rel (0) target = $region33
    $region32: #{attn_decoder_forward.1} parent=1 // pred_region
      %732 = vsyncadd [#allocation4], 0
      %s734 = sshll.u32 [#allocation5], 4
      %s735 = int_to_ptr.vmem [resolvable:$true] %s734
      %s736 = sshll.u32 %s6, 4
      %s737 = int_to_ptr.hbm [resolvable:$true] %s736
      %739 = dma.vmem_to_hbm [thread:$0]  %s735, 128, %s737, [#allocation4]
    $region33: #{attn_decoder_forward.1} parent=1 // pred_fallthru
      _
    // Predicated region
    $region34: #{attn_decoder_forward.1} parent=1 // pred_check
      _
    $region35: #{attn_decoder_forward.1} parent=1 // pred_check_branch
      %741 = sbr.rel (0) target = $region37
    $region36: #{attn_decoder_forward.1} parent=1 // pred_region
      %743 = vsyncadd [#allocation7], 0
      %s744 = sshll.u32 [#allocation6], 4
      %s745 = int_to_ptr.vmem [resolvable:$true] %s744
      %s746 = sshll.u32 %s7, 4
      %s747 = int_to_ptr.hbm [resolvable:$true] %s746
      %752 = dma.vmem_to_hbm [thread:$0]  %s745, 256, %s747, [#allocation7], 128, 128, 8
    $region37: #{attn_decoder_forward.1} parent=1 // pred_fallthru
      _
    // Predicated region
    $region38: #{attn_decoder_forward.1} parent=1 // pred_check
      _
    $region39: #{attn_decoder_forward.1} parent=1 // pred_check_branch
      %754 = sbr.rel (0) target = $region41
    $region40: #{attn_decoder_forward.1} parent=1 // pred_region
      %756 = dma.done [#allocation4], 128
    $region41: #{attn_decoder_forward.1} parent=1 // pred_fallthru
      _
    // Predicated region
    $region42: #{attn_decoder_forward.1} parent=1 // pred_check
      _
    $region43: #{attn_decoder_forward.1} parent=1 // pred_check_branch
      %758 = sbr.rel (0) target = $region45
    $region44: #{attn_decoder_forward.1} parent=1 // pred_region
      %760 = dma.done [#allocation7], 256
    $region45: #{attn_decoder_forward.1} parent=1 // pred_fallthru
      _
    %761 = vsyncpa [#allocation3], 1
    %762 = vsyncpa [#allocation4], 1
    %763 = vsyncpa [#allocation7], 1

</llo_original>
